<compile_context>
chip_gen: v7x
topology: tpu7x:2x2x1
jax: 0.10.0
libtpu: 0.0.40
codegen_flags: <defaults>
</compile_context>

<pallas_src>
import jax
import jax.numpy as jnp
from jax.experimental import pallas as pl
from jax.experimental.pallas import tpu as pltpu


def _round_up(v, m):
    return ((v + m - 1) // m) * m


def _classify_kernel(pool_ref, w1_ref, b1_ref, w2_ref, b2_ref, wh_ref, bh_ref,
                     out_ref, h1_acc):
    """One (row-tile, K-tile) grid step.

    fc6 is accumulated over the K axis into `h1_acc`; fc7 and the fused
    cls_loc|score head run once per row tile on the final K step.
    """
    k = pl.program_id(1)

    @pl.when(k == 0)
    def _():
        h1_acc[...] = jnp.zeros_like(h1_acc)

    # fc6 partial product: (TM, tk) @ (tk, H), f32 accumulation on the MXU.
    h1_acc[...] += jnp.dot(pool_ref[...], w1_ref[...],
                           preferred_element_type=jnp.float32)

    @pl.when(k == pl.num_programs(1) - 1)
    def _():
        # fc6 bias + ReLU
        h1 = jnp.maximum(h1_acc[...] + b1_ref[...], 0.0)
        h1 = h1.astype(w2_ref.dtype)
        # fc7 + ReLU
        h2 = jnp.dot(h1, w2_ref[...], preferred_element_type=jnp.float32)
        h2 = jnp.maximum(h2 + b2_ref[...], 0.0).astype(wh_ref.dtype)
        # Fused cls_loc | score head; output lane dim is a multiple of 128
        # so the store is a lane-dense unmasked vst.
        out = jnp.dot(h2, wh_ref[...], preferred_element_type=jnp.float32)
        out_ref[...] = (out + bh_ref[...]).astype(out_ref.dtype)


def classify_forward(x, pool, params, *, row_tile=128, k_tile=512,
                     compute_dtype=jnp.bfloat16):
    """Pallas equivalent of Classify.forward(x, pool).

    Args:
      x:    (n, C, H, W) image-batch tensor; only its leading dim `n` is used.
      pool: (R, Cp, ph, pw) ROI-pooled features.
      params: dict of weights/biases (see init_params).
    Returns:
      roi_cls_locs: (n, R // n, n_class * 4)
      roi_scores:   (n, R // n, n_class)
    """
    n = x.shape[0]
    R = pool.shape[0]
    if R % n != 0:
        raise ValueError("Number of ROIs must be divisible by batch size "
                         "(same requirement as the PyTorch .view).")
    pool2d = pool.reshape(R, -1)
    D = pool2d.shape[1]

    w1, b1 = params["w1"], params["b1"]
    w2, b2 = params["w2"], params["b2"]
    wloc, bloc = params["w_loc"], params["b_loc"]
    wsc, bsc = params["w_score"], params["b_score"]
    H = w1.shape[1]
    LOC = wloc.shape[1]
    CLS = wsc.shape[1]

    # ---- tiling ----------------------------------------------------------
    TM = max(8, min(row_tile, _round_up(R, 8)))    # row tile, multiple of 8
    R_pad = _round_up(R, TM)

    tk = _round_up(min(k_tile, _round_up(D, 128)), 128)  # K tile, mult of 128
    D_pad = _round_up(D, tk)

    H_pad = _round_up(H, 128)                      # hidden, lane-dense
    NH = LOC + CLS
    N_pad = _round_up(NH, 128)                     # fused head, lane-dense

    # ---- operand prep (bf16 weights/activations, f32 biases) -------------
    pool_p = jnp.pad(pool2d.astype(compute_dtype),
                     ((0, R_pad - R), (0, D_pad - D)))
    w1_p = jnp.pad(w1.astype(compute_dtype),
                   ((0, D_pad - D), (0, H_pad - H)))
    w2_p = jnp.pad(w2.astype(compute_dtype),
                   ((0, H_pad - H), (0, H_pad - H)))
    w_head = jnp.pad(
        jnp.concatenate([wloc, wsc], axis=1).astype(compute_dtype),
        ((0, H_pad - H), (0, N_pad - NH)))
    b1_p = jnp.pad(b1.reshape(1, H).astype(jnp.float32),
                   ((0, 0), (0, H_pad - H)))
    b2_p = jnp.pad(b2.reshape(1, H).astype(jnp.float32),
                   ((0, 0), (0, H_pad - H)))
    b_head = jnp.pad(
        jnp.concatenate([bloc.reshape(1, LOC), bsc.reshape(1, CLS)],
                        axis=1).astype(jnp.float32),
        ((0, 0), (0, N_pad - NH)))

    grid = (R_pad // TM, D_pad // tk)

    # Grid-invariant (resident) blocks: constant index_map -> fetched once.
    # TODO(synk): at full production scale (H=4096) on v7x (64 MiB VMEM) w2
    # should additionally be N-tiled instead of kept as one resident block.
    def full(shape):
        return pl.BlockSpec(shape, lambda i, k: (0,) * len(shape))

    # ---- cost estimate & VMEM budget --------------------------------------
    flops = 2 * R_pad * (D_pad * H_pad + H_pad * H_pad + H_pad * N_pad)
    bytes_accessed = (pool_p.size * pool_p.dtype.itemsize
                      + w1_p.size * w1_p.dtype.itemsize
                      + w2_p.size * w2_p.dtype.itemsize
                      + w_head.size * w_head.dtype.itemsize
                      + (b1_p.size + b2_p.size + b_head.size) * 4
                      + R_pad * N_pad * 4)
    cost = pl.CostEstimate(flops=int(flops), transcendentals=0,
                           bytes_accessed=int(bytes_accessed))

    try:
        vmem_cap = pltpu.get_tpu_info().vmem_capacity_bytes
    except Exception:
        vmem_cap = 64 * 1024 * 1024
    vmem_limit = min(int(vmem_cap * 0.85), 110 * 1024 * 1024)

    out = pl.pallas_call(
        _classify_kernel,
        out_shape=jax.ShapeDtypeStruct((R_pad, N_pad), jnp.float32),
        grid_spec=pltpu.PrefetchScalarGridSpec(
            num_scalar_prefetch=0,
            grid=grid,
            in_specs=[
                pl.BlockSpec((TM, tk), lambda i, k: (i, k)),     # pool tile
                pl.BlockSpec((tk, H_pad), lambda i, k: (k, 0)),  # w1, K-streamed
                full((1, H_pad)),                                # b1
                full((H_pad, H_pad)),                            # w2 (resident)
                full((1, H_pad)),                                # b2
                full((H_pad, N_pad)),                            # fused head W
                full((1, N_pad)),                                # fused head b
            ],
            out_specs=pl.BlockSpec((TM, N_pad), lambda i, k: (i, 0)),
            scratch_shapes=[pltpu.VMEM((TM, H_pad), jnp.float32)],  # fc6 acc
        ),
        compiler_params=pltpu.CompilerParams(
            dimension_semantics=("parallel", "arbitrary"),
            vmem_limit_bytes=vmem_limit),
        cost_estimate=cost,
    )(pool_p, w1_p, b1_p, w2_p, b2_p, w_head, b_head)

    loc_out = out[:R, :LOC]
    score_out = out[:R, LOC:NH]

    roi_cls_locs = loc_out.reshape(n, -1, LOC)
    roi_scores = score_out.reshape(n, -1, CLS)
    return roi_cls_locs, roi_scores


def init_params(key, in_dim, hidden, n_class):
    """Deterministic parameter init mirroring the PyTorch module's shapes."""
    ks = jax.random.split(key, 4)
    return {
        "w1": jax.random.normal(ks[0], (in_dim, hidden), jnp.float32) * 0.01,
        "b1": jnp.zeros((1, hidden), jnp.float32),
        "w2": jax.random.normal(ks[1], (hidden, hidden), jnp.float32) * 0.01,
        "b2": jnp.zeros((1, hidden), jnp.float32),
        "w_loc": jax.random.normal(ks[2], (hidden, n_class * 4), jnp.float32) * 0.001,
        "b_loc": jnp.zeros((1, n_class * 4), jnp.float32),
        "w_score": jax.random.normal(ks[3], (hidden, n_class), jnp.float32) * 0.01,
        "b_score": jnp.zeros((1, n_class), jnp.float32),
    }


def _reference(x, pool, params, compute_dtype=jnp.bfloat16):
    """Pure-JAX reference using the same bf16-weight / f32-accumulate recipe."""
    n = x.shape[0]
    p = pool.reshape(pool.shape[0], -1).astype(compute_dtype)
    w1 = params["w1"].astype(compute_dtype)
    w2 = params["w2"].astype(compute_dtype)
    wl = params["w_loc"].astype(compute_dtype)
    ws = params["w_score"].astype(compute_dtype)
    h1 = jnp.maximum(jnp.dot(p, w1, preferred_element_type=jnp.float32)
                     + params["b1"].reshape(1, -1), 0.0).astype(compute_dtype)
    h2 = jnp.maximum(jnp.dot(h1, w2, preferred_element_type=jnp.float32)
                     + params["b2"].reshape(1, -1), 0.0).astype(compute_dtype)
    loc = (jnp.dot(h2, wl, preferred_element_type=jnp.float32)
           + params["b_loc"].reshape(1, -1))
    sc = (jnp.dot(h2, ws, preferred_element_type=jnp.float32)
          + params["b_score"].reshape(1, -1))
    return loc.reshape(n, -1, loc.shape[1]), sc.reshape(n, -1, sc.shape[1])


if __name__ == "__main__":
    # Small shapes consistent with the forward pass:
    #   x:    (n=2, 4, 16, 16)          -> only n is consumed
    #   pool: (R=8, Cp=4, ph=8, pw=8)   -> flattened ROI features, D=256
    # The real module uses D = 512*7*7 = 25088 and hidden = 4096; this is a
    # scaled-down D=256, hidden=256, n_class=4 synthetic configuration.
    key = jax.random.PRNGKey(0)
    kx, kp, kw = jax.random.split(key, 3)

    n, C, Himg, Wimg = 2, 4, 16, 16
    R, Cp, ph, pw = 8, 4, 8, 8
    in_dim = Cp * ph * pw            # 256
    hidden = 256
    n_class = 4

    x = jax.random.normal(kx, (n, C, Himg, Wimg), jnp.float32)
    pool = jax.random.normal(kp, (R, Cp, ph, pw), jnp.float32)
    params = init_params(kw, in_dim, hidden, n_class)

    roi_cls_locs, roi_scores = classify_forward(x, pool, params)
    jax.block_until_ready((roi_cls_locs, roi_scores))

    ref_locs, ref_scores = _reference(x, pool, params)
    assert roi_cls_locs.shape == (n, R // n, n_class * 4)
    assert roi_scores.shape == (n, R // n, n_class)
    assert jnp.allclose(roi_cls_locs, ref_locs, atol=1e-5, rtol=1e-2)
    assert jnp.allclose(roi_scores, ref_scores, atol=1e-5, rtol=1e-2)

    print("KERNEL_OK")
</pallas_src>

<mosaic_0001>
module attributes {stable_mosaic.version = 11 : i64} {
  func.func @_classify_kernel(%arg0: i32, %arg1: i32, %arg2: memref<8x256xbf16, #tpu.memory_space<vmem>>, %arg3: memref<256x256xbf16, #tpu.memory_space<vmem>>, %arg4: memref<1x256xf32, #tpu.memory_space<vmem>>, %arg5: memref<256x256xbf16, #tpu.memory_space<vmem>>, %arg6: memref<1x256xf32, #tpu.memory_space<vmem>>, %arg7: memref<256x128xbf16, #tpu.memory_space<vmem>>, %arg8: memref<1x128xf32, #tpu.memory_space<vmem>>, %arg9: memref<8x128xf32, #tpu.memory_space<vmem>>, %arg10: memref<8x256xf32, #tpu.memory_space<vmem>>) attributes {dimension_semantics = [#tpu.dimension_semantics<parallel>, #tpu.dimension_semantics<arbitrary>], iteration_bounds = array<i64: 1, 1>, scalar_prefetch = 0 : i64, scratch_operands = 1 : i64, tpu.core_type = #tpu.core_type<tc>, window_params = [{transform_indices = @transform_0, window_bounds = array<i64: 8, 256>}, {transform_indices = @transform_1, window_bounds = array<i64: 256, 256>}, {pipeline_mode = #tpu.pipeline_mode<synchronous>, transform_indices = @transform_2, window_bounds = array<i64: 1, 256>}, {pipeline_mode = #tpu.pipeline_mode<synchronous>, transform_indices = @transform_3, window_bounds = array<i64: 256, 256>}, {pipeline_mode = #tpu.pipeline_mode<synchronous>, transform_indices = @transform_4, window_bounds = array<i64: 1, 256>}, {pipeline_mode = #tpu.pipeline_mode<synchronous>, transform_indices = @transform_5, window_bounds = array<i64: 256, 128>}, {pipeline_mode = #tpu.pipeline_mode<synchronous>, transform_indices = @transform_6, window_bounds = array<i64: 1, 128>}, {transform_indices = @transform_7, window_bounds = array<i64: 8, 128>}]} {
    %c0_i32 = arith.constant 0 : i32
    %0 = arith.cmpi eq, %arg1, %c0_i32 : i32
    %1 = arith.extui %0 : i1 to i32
    %c0_i32_0 = arith.constant 0 : i32
    %2 = arith.cmpi ne, %1, %c0_i32_0 : i32
    scf.if %2 {
      %cst_10 = arith.constant 0.000000e+00 : f32
      %12 = vector.broadcast %cst_10 : f32 to vector<8x256xf32>
      %c0_11 = arith.constant 0 : index
      %c0_12 = arith.constant 0 : index
      %13 = vector.load %arg10[%c0_11, %c0_12] : memref<8x256xf32, #tpu.memory_space<vmem>>, vector<8x256xf32>
      tpu.vector_store %arg10[%c0_11, %c0_12], %12 {strides = array<i32>} : memref<8x256xf32, #tpu.memory_space<vmem>>, vector<8x256xf32>,
    } else {
    }
    %c0 = arith.constant 0 : index
    %c0_1 = arith.constant 0 : index
    %3 = vector.load %arg10[%c0, %c0_1] : memref<8x256xf32, #tpu.memory_space<vmem>>, vector<8x256xf32>
    %c0_2 = arith.constant 0 : index
    %c0_3 = arith.constant 0 : index
    %4 = vector.load %arg2[%c0_2, %c0_3] : memref<8x256xbf16, #tpu.memory_space<vmem>>, vector<8x256xbf16>
    %c0_4 = arith.constant 0 : index
    %c0_5 = arith.constant 0 : index
    %5 = vector.load %arg3[%c0_4, %c0_5] : memref<256x256xbf16, #tpu.memory_space<vmem>>, vector<256x256xbf16>
    %cst = arith.constant dense<0.000000e+00> : vector<8x256xf32>
    %6 = tpu.matmul %4, %5, %cst {dimension_numbers = #tpu.dot_dimension_numbers<[1], [0], [0], [1], [0, 0, 1, 1], [], []>} : vector<8x256xbf16>, vector<256x256xbf16>, vector<8x256xf32> -> vector<8x256xf32>
    %7 = arith.addf %3, %6 : vector<8x256xf32>
    %c0_6 = arith.constant 0 : index
    %c0_7 = arith.constant 0 : index
    %8 = vector.load %arg10[%c0_6, %c0_7] : memref<8x256xf32, #tpu.memory_space<vmem>>, vector<8x256xf32>
    tpu.vector_store %arg10[%c0_6, %c0_7], %7 {strides = array<i32>} : memref<8x256xf32, #tpu.memory_space<vmem>>, vector<8x256xf32>,
    %c0_i32_8 = arith.constant 0 : i32
    %9 = arith.cmpi eq, %arg1, %c0_i32_8 : i32
    %10 = arith.extui %9 : i1 to i32
    %c0_i32_9 = arith.constant 0 : i32
    %11 = arith.cmpi ne, %10, %c0_i32_9 : i32
    scf.if %11 {
      %c0_10 = arith.constant 0 : index
      %c0_11 = arith.constant 0 : index
      %12 = vector.load %arg10[%c0_10, %c0_11] : memref<8x256xf32, #tpu.memory_space<vmem>>, vector<8x256xf32>
      %c0_12 = arith.constant 0 : index
      %c0_13 = arith.constant 0 : index
      %13 = vector.load %arg4[%c0_12, %c0_13] : memref<1x256xf32, #tpu.memory_space<vmem>>, vector<1x256xf32>
      %14 = vector.broadcast %13 : vector<1x256xf32> to vector<8x256xf32>
      %15 = arith.addf %12, %14 : vector<8x256xf32>
      %cst_14 = arith.constant 0.000000e+00 : f32
      %16 = vector.broadcast %cst_14 : f32 to vector<8x256xf32>
      %17 = arith.maximumf %15, %16 : vector<8x256xf32>
      %18 = arith.truncf %17 : vector<8x256xf32> to vector<8x256xbf16>
      %c0_15 = arith.constant 0 : index
      %c0_16 = arith.constant 0 : index
      %19 = vector.load %arg5[%c0_15, %c0_16] : memref<256x256xbf16, #tpu.memory_space<vmem>>, vector<256x256xbf16>
      %cst_17 = arith.constant dense<0.000000e+00> : vector<8x256xf32>
      %20 = tpu.matmul %18, %19, %cst_17 {dimension_numbers = #tpu.dot_dimension_numbers<[1], [0], [0], [1], [0, 0, 1, 1], [], []>} : vector<8x256xbf16>, vector<256x256xbf16>, vector<8x256xf32> -> vector<8x256xf32>
      %c0_18 = arith.constant 0 : index
      %c0_19 = arith.constant 0 : index
      %21 = vector.load %arg6[%c0_18, %c0_19] : memref<1x256xf32, #tpu.memory_space<vmem>>, vector<1x256xf32>
      %22 = vector.broadcast %21 : vector<1x256xf32> to vector<8x256xf32>
      %23 = arith.addf %20, %22 : vector<8x256xf32>
      %cst_20 = arith.constant 0.000000e+00 : f32
      %24 = vector.broadcast %cst_20 : f32 to vector<8x256xf32>
      %25 = arith.maximumf %23, %24 : vector<8x256xf32>
      %26 = arith.truncf %25 : vector<8x256xf32> to vector<8x256xbf16>
      %c0_21 = arith.constant 0 : index
      %c0_22 = arith.constant 0 : index
      %27 = vector.load %arg7[%c0_21, %c0_22] : memref<256x128xbf16, #tpu.memory_space<vmem>>, vector<256x128xbf16>
      %cst_23 = arith.constant dense<0.000000e+00> : vector<8x128xf32>
      %28 = tpu.matmul %26, %27, %cst_23 {dimension_numbers = #tpu.dot_dimension_numbers<[1], [0], [0], [1], [0, 0, 1, 1], [], []>} : vector<8x256xbf16>, vector<256x128xbf16>, vector<8x128xf32> -> vector<8x128xf32>
      %c0_24 = arith.constant 0 : index
      %c0_25 = arith.constant 0 : index
      %29 = vector.load %arg8[%c0_24, %c0_25] : memref<1x128xf32, #tpu.memory_space<vmem>>, vector<1x128xf32>
      %30 = vector.broadcast %29 : vector<1x128xf32> to vector<8x128xf32>
      %31 = arith.addf %28, %30 : vector<8x128xf32>
      %c0_26 = arith.constant 0 : index
      %c0_27 = arith.constant 0 : index
      %32 = vector.load %arg9[%c0_26, %c0_27] : memref<8x128xf32, #tpu.memory_space<vmem>>, vector<8x128xf32>
      tpu.vector_store %arg9[%c0_26, %c0_27], %31 {strides = array<i32>} : memref<8x128xf32, #tpu.memory_space<vmem>>, vector<8x128xf32>,
    } else {
    }
    return
  }
  func.func @transform_0(%arg0: i32, %arg1: i32) -> (i32, i32) {
    %c0_i32 = arith.constant 0 : i32
    return %arg0, %arg1 : i32, i32
  }
  func.func @transform_1(%arg0: i32, %arg1: i32) -> (i32, i32) {
    %c0_i32 = arith.constant 0 : i32
    %c0_i32_0 = arith.constant 0 : i32
    return %arg1, %c0_i32 : i32, i32
  }
  func.func @transform_2(%arg0: i32, %arg1: i32) -> (i32, i32) {
    %c0_i32 = arith.constant 0 : i32
    %c0_i32_0 = arith.constant 0 : i32
    %c0_i32_1 = arith.constant 0 : i32
    return %c0_i32, %c0_i32_0 : i32, i32
  }
  func.func @transform_3(%arg0: i32, %arg1: i32) -> (i32, i32) {
    %c0_i32 = arith.constant 0 : i32
    %c0_i32_0 = arith.constant 0 : i32
    %c0_i32_1 = arith.constant 0 : i32
    return %c0_i32, %c0_i32_0 : i32, i32
  }
  func.func @transform_4(%arg0: i32, %arg1: i32) -> (i32, i32) {
    %c0_i32 = arith.constant 0 : i32
    %c0_i32_0 = arith.constant 0 : i32
    %c0_i32_1 = arith.constant 0 : i32
    return %c0_i32, %c0_i32_0 : i32, i32
  }
  func.func @transform_5(%arg0: i32, %arg1: i32) -> (i32, i32) {
    %c0_i32 = arith.constant 0 : i32
    %c0_i32_0 = arith.constant 0 : i32
    %c0_i32_1 = arith.constant 0 : i32
    return %c0_i32, %c0_i32_0 : i32, i32
  }
  func.func @transform_6(%arg0: i32, %arg1: i32) -> (i32, i32) {
    %c0_i32 = arith.constant 0 : i32
    %c0_i32_0 = arith.constant 0 : i32
    %c0_i32_1 = arith.constant 0 : i32
    return %c0_i32, %c0_i32_0 : i32, i32
  }
  func.func @transform_7(%arg0: i32, %arg1: i32) -> (i32, i32) {
    %c0_i32 = arith.constant 0 : i32
    %c0_i32_0 = arith.constant 0 : i32
    return %arg0, %c0_i32 : i32, i32
  }
}

</mosaic_0001>

<llo_original>
// kernel: tpu_custom_call.1
$region0: #{tpu_custom_call.1}
  #allocation0 [shape = 'u32[]', space=smem, size = 0x4, offset = 0x4, fixed_abs, tag = 'smem constant byte address 0x4 - core index']
  #allocation1 [shape = 'u32[144,128]{1,0:T(1,128)}', space=vmem, size = 0x12000, scoped, tag = 'internal scratch']
  #allocation2 [shape = 'f32[8,256]{1,0:T(8,128)}', space=vmem, size = 0x2000, scoped, tag = 'scratch operand']
  %s0 = inlined_call_operand.hbm [shape: bf16[8,256], index: 0, kind: input, shape index: {}]
  %s1 = inlined_call_operand.hbm [shape: bf16[256,256], index: 1, kind: input, shape index: {}]
  %s2 = inlined_call_operand.vmem [shape: f32[1,256], index: 2, kind: input, shape index: {}]
  %s3 = inlined_call_operand.hbm [shape: bf16[256,256], index: 3, kind: input, shape index: {}]
  %s4 = inlined_call_operand.vmem [shape: f32[1,256], index: 4, kind: input, shape index: {}]
  %s5 = inlined_call_operand.hbm [shape: bf16[256,128], index: 5, kind: input, shape index: {}]
  %s6 = inlined_call_operand.vmem [shape: f32[1,128], index: 6, kind: input, shape index: {}]
  %s7 = inlined_call_operand.hbm [shape: f32[8,128], index: 7, kind: output, shape index: {}]
  %s8 = sld [smem:[#allocation0]]
  $region62: #{tpu_custom_call.1} parent=0
    _
  %s10 = ssub.s32 1, %s8
  %s11 = scalar_select 0, %s10, %s8
  $region1: #{tpu_custom_call.1} parent=0
    #allocation3 [shape = 'u8[4096]{0}', space=vmem, size = 0x1000, scoped, tag = 'input window, operand 0, single buffered']
    #allocation4 [shape = 's32[1]{0}', space=sflag, size = 0x4, scoped, tag = 'scoped memory for tpu_custom_call.1']
    #allocation5 [shape = 's32[1]{0}', space=sflag, size = 0x4, scoped, tag = 'scoped memory for tpu_custom_call.1']
    #allocation6 [shape = 'u8[131072]{0}', space=vmem, size = 0x20000, scoped, tag = 'input window, operand 1, single buffered']
    #allocation7 [shape = 's32[1]{0}', space=sflag, size = 0x4, scoped, tag = 'scoped memory for tpu_custom_call.1']
    #allocation8 [shape = 'u8[131072]{0}', space=vmem, size = 0x20000, scoped, tag = 'input window, operand 3, single buffered']
    #allocation9 [shape = 'u8[65536]{0}', space=vmem, size = 0x10000, scoped, tag = 'input window, operand 5, single buffered']
    #allocation10 [shape = 's32[1]{0}', space=sflag, size = 0x4, scoped, tag = 'scoped memory for tpu_custom_call.1']
    #allocation11 [shape = 'u8[4096]{0}', space=vmem, size = 0x1000, scoped, tag = 'output window, operand 0, single buffered']
    %12 = vsyncpa [#allocation4], 0
    %13 = vsyncpa [#allocation7], 0
    %14 = vsyncpa [#allocation10], 0
    %15 = vsyncpa [#allocation5], 0
    // Predicated region
    $region2: #{tpu_custom_call.1} parent=1 // pred_check
      _
    $region3: #{tpu_custom_call.1} parent=1 // pred_check_branch
      %17 = sbr.rel (0) target = $region5
    $region4: #{tpu_custom_call.1} parent=1 // pred_region
      %s19 = ssub.s32 128, 128
      %20 = vsyncadd [#allocation4], %s19
      %s22 = sshll.u32 [#allocation3], 4
      %s23 = int_to_ptr.vmem [resolvable:$true] %s22
      %25 = dma.hbm_to_vmem [thread:$0]  %s0, 128, %s23, [#allocation4]
    $region5: #{tpu_custom_call.1} parent=1 // pred_fallthru
      _
    // Predicated region
    $region6: #{tpu_custom_call.1} parent=1 // pred_check
      _
    $region7: #{tpu_custom_call.1} parent=1 // pred_check_branch
      %27 = sbr.rel (0) target = $region9
    $region8: #{tpu_custom_call.1} parent=1 // pred_region
      %s29 = ssub.s32 4096, 4096
      %30 = vsyncadd [#allocation7], %s29
      %s31 = sshll.u32 [#allocation6], 4
      %s32 = int_to_ptr.vmem [resolvable:$true] %s31
      %37 = dma.hbm_to_vmem [thread:$0]  %s1, 4096, %s32, [#allocation7], 128, 128, 8
    $region9: #{tpu_custom_call.1} parent=1 // pred_fallthru
      _
    // Predicated region
    $region10: #{tpu_custom_call.1} parent=1 // pred_check
      _
    $region11: #{tpu_custom_call.1} parent=1 // pred_check_branch
      %39 = sbr.rel (0) target = $region13
    $region12: #{tpu_custom_call.1} parent=1 // pred_region
      _
    $region13: #{tpu_custom_call.1} parent=1 // pred_fallthru
      _
    // Predicated region
    $region14: #{tpu_custom_call.1} parent=1 // pred_check
      _
    $region15: #{tpu_custom_call.1} parent=1 // pred_check_branch
      %41 = sbr.rel (0) target = $region17
    $region16: #{tpu_custom_call.1} parent=1 // pred_region
      %s43 = ssub.s32 4096, 4096
      %44 = vsyncadd [#allocation7], %s43
      %s45 = sshll.u32 [#allocation8], 4
      %s46 = int_to_ptr.vmem [resolvable:$true] %s45
      %51 = dma.hbm_to_vmem [thread:$0]  %s3, 4096, %s46, [#allocation7], 128, 128, 8
    $region17: #{tpu_custom_call.1} parent=1 // pred_fallthru
      _
    // Predicated region
    $region18: #{tpu_custom_call.1} parent=1 // pred_check
      _
    $region19: #{tpu_custom_call.1} parent=1 // pred_check_branch
      %53 = sbr.rel (0) target = $region21
    $region20: #{tpu_custom_call.1} parent=1 // pred_region
      _
    $region21: #{tpu_custom_call.1} parent=1 // pred_fallthru
      _
    // Predicated region
    $region22: #{tpu_custom_call.1} parent=1 // pred_check
      _
    $region23: #{tpu_custom_call.1} parent=1 // pred_check_branch
      %55 = sbr.rel (0) target = $region25
    $region24: #{tpu_custom_call.1} parent=1 // pred_region
      %s57 = ssub.s32 2048, 2048
      %58 = vsyncadd [#allocation10], %s57
      %s59 = sshll.u32 [#allocation9], 4
      %s60 = int_to_ptr.vmem [resolvable:$true] %s59
      %65 = dma.hbm_to_vmem [thread:$0]  %s5, 2048, %s60, [#allocation10], 64, 64, 4
    $region25: #{tpu_custom_call.1} parent=1 // pred_fallthru
      _
    // Predicated region
    $region26: #{tpu_custom_call.1} parent=1 // pred_check
      _
    $region27: #{tpu_custom_call.1} parent=1 // pred_check_branch
      %67 = sbr.rel (0) target = $region29
    $region28: #{tpu_custom_call.1} parent=1 // pred_region
      _
    $region29: #{tpu_custom_call.1} parent=1 // pred_fallthru
      _
    // Predicated region
    $region30: #{tpu_custom_call.1} parent=1 // pred_check
      _
    $region31: #{tpu_custom_call.1} parent=1 // pred_check_branch
      %69 = sbr.rel (0) target = $region33
    $region32: #{tpu_custom_call.1} parent=1 // pred_region
      %70 = dma.done [#allocation4], 128
    $region33: #{tpu_custom_call.1} parent=1 // pred_fallthru
      _
    // Predicated region
    $region34: #{tpu_custom_call.1} parent=1 // pred_check
      _
    $region35: #{tpu_custom_call.1} parent=1 // pred_check_branch
      %72 = sbr.rel (0) target = $region37
    $region36: #{tpu_custom_call.1} parent=1 // pred_region
      %73 = dma.done [#allocation7], 4096
    $region37: #{tpu_custom_call.1} parent=1 // pred_fallthru
      _
    // Predicated region
    $region38: #{tpu_custom_call.1} parent=1 // pred_check
      _
    $region39: #{tpu_custom_call.1} parent=1 // pred_check_branch
      %75 = sbr.rel (0) target = $region41
    $region40: #{tpu_custom_call.1} parent=1 // pred_region
      %76 = dma.done [#allocation7], 4096
    $region41: #{tpu_custom_call.1} parent=1 // pred_fallthru
      _
    // Predicated region
    $region42: #{tpu_custom_call.1} parent=1 // pred_check
      _
    $region43: #{tpu_custom_call.1} parent=1 // pred_check_branch
      %78 = sbr.rel (0) target = $region45
    $region44: #{tpu_custom_call.1} parent=1 // pred_region
      %79 = dma.done [#allocation10], 2048
    $region45: #{tpu_custom_call.1} parent=1 // pred_fallthru
      _
    %p81 = scmp.eq.s32.totalorder 0, 0
    // Predicated region
    $region46: #{tpu_custom_call.1} parent=1 // pred_check
      %p82 = pneg %p81
    $region47: #{tpu_custom_call.1} parent=1 // pred_check_branch
      %84 = sbr.rel (%p82) target = $region49
    $region48: #{tpu_custom_call.1} parent=1 // pred_region
      %85 = vst [vmem:[#allocation2] sm:$0xff] 0.0
      %86 = vst [vmem:[#allocation2 + $0x8] sm:$0xff] 0.0
    $region49: #{tpu_custom_call.1} parent=1 // pred_fallthru
      _
    %v87 = vld [vmem:[#allocation2] sm:$0xff]
    %v88 = vld [vmem:[#allocation2 + $0x8] sm:$0xff]
    %v89 = vld [vmem:[#allocation3] sm:$0xff]
    %v90 = vld [vmem:[#allocation6] sm:$0xff]
    %v91 = vld [vmem:[#allocation6 + $0x8] sm:$0xff]
    %v92 = vld [vmem:[#allocation6 + $0x10] sm:$0xff]
    %v93 = vld [vmem:[#allocation6 + $0x18] sm:$0xff]
    %v94 = vld [vmem:[#allocation6 + $0x20] sm:$0xff]
    %v95 = vld [vmem:[#allocation6 + $0x28] sm:$0xff]
    %v96 = vld [vmem:[#allocation6 + $0x30] sm:$0xff]
    %v97 = vld [vmem:[#allocation6 + $0x38] sm:$0xff]
    %v98 = vld [vmem:[#allocation6 + $0x40] sm:$0xff]
    %v99 = vld [vmem:[#allocation6 + $0x48] sm:$0xff]
    %v100 = vld [vmem:[#allocation6 + $0x50] sm:$0xff]
    %v101 = vld [vmem:[#allocation6 + $0x58] sm:$0xff]
    %v102 = vld [vmem:[#allocation6 + $0x60] sm:$0xff]
    %v103 = vld [vmem:[#allocation6 + $0x68] sm:$0xff]
    %v104 = vld [vmem:[#allocation6 + $0x70] sm:$0xff]
    %v105 = vld [vmem:[#allocation6 + $0x78] sm:$0xff]
    %v106 = vld [vmem:[#allocation6 + $0x80] sm:$0xff]
    %v107 = vld [vmem:[#allocation6 + $0x88] sm:$0xff]
    %v108 = vld [vmem:[#allocation6 + $0x90] sm:$0xff]
    %v109 = vld [vmem:[#allocation6 + $0x98] sm:$0xff]
    %v110 = vld [vmem:[#allocation6 + $0xa0] sm:$0xff]
    %v111 = vld [vmem:[#allocation6 + $0xa8] sm:$0xff]
    %v112 = vld [vmem:[#allocation6 + $0xb0] sm:$0xff]
    %v113 = vld [vmem:[#allocation6 + $0xb8] sm:$0xff]
    %v114 = vld [vmem:[#allocation6 + $0xc0] sm:$0xff]
    %v115 = vld [vmem:[#allocation6 + $0xc8] sm:$0xff]
    %v116 = vld [vmem:[#allocation6 + $0xd0] sm:$0xff]
    %v117 = vld [vmem:[#allocation6 + $0xd8] sm:$0xff]
    %v118 = vld [vmem:[#allocation6 + $0xe0] sm:$0xff]
    %v119 = vld [vmem:[#allocation6 + $0xe8] sm:$0xff]
    %v120 = vld [vmem:[#allocation6 + $0xf0] sm:$0xff]
    %v121 = vld [vmem:[#allocation6 + $0xf8] sm:$0xff]
    %v123 = vunpack.c.l.b16 %v89
    %v124 = vunpack.c.h.b16 %v89
    %v125 = vpack.c.b16 %v123, %v123
    %v126 = vpack.c.b16 %v124, %v124
    %v161 = vunpack.c.l.b16 %v90
    %v162 = vunpack.c.h.b16 %v90
    %v163 = vunpack.c.l.b16 %v91
    %v164 = vunpack.c.h.b16 %v91
    %v165 = vunpack.c.l.b16 %v92
    %v166 = vunpack.c.h.b16 %v92
    %v167 = vunpack.c.l.b16 %v93
    %v168 = vunpack.c.h.b16 %v93
    %v169 = vunpack.c.l.b16 %v94
    %v170 = vunpack.c.h.b16 %v94
    %v171 = vunpack.c.l.b16 %v95
    %v172 = vunpack.c.h.b16 %v95
    %v173 = vunpack.c.l.b16 %v96
    %v174 = vunpack.c.h.b16 %v96
    %v175 = vunpack.c.l.b16 %v97
    %v176 = vunpack.c.h.b16 %v97
    %v177 = vunpack.c.l.b16 %v98
    %v178 = vunpack.c.h.b16 %v98
    %v179 = vunpack.c.l.b16 %v99
    %v180 = vunpack.c.h.b16 %v99
    %v181 = vunpack.c.l.b16 %v100
    %v182 = vunpack.c.h.b16 %v100
    %v183 = vunpack.c.l.b16 %v101
    %v184 = vunpack.c.h.b16 %v101
    %v185 = vunpack.c.l.b16 %v102
    %v186 = vunpack.c.h.b16 %v102
    %v187 = vunpack.c.l.b16 %v103
    %v188 = vunpack.c.h.b16 %v103
    %v189 = vunpack.c.l.b16 %v104
    %v190 = vunpack.c.h.b16 %v104
    %v191 = vunpack.c.l.b16 %v105
    %v192 = vunpack.c.h.b16 %v105
    %v193 = vunpack.c.l.b16 %v106
    %v194 = vunpack.c.h.b16 %v106
    %v195 = vunpack.c.l.b16 %v107
    %v196 = vunpack.c.h.b16 %v107
    %v197 = vunpack.c.l.b16 %v108
    %v198 = vunpack.c.h.b16 %v108
    %v199 = vunpack.c.l.b16 %v109
    %v200 = vunpack.c.h.b16 %v109
    %v201 = vunpack.c.l.b16 %v110
    %v202 = vunpack.c.h.b16 %v110
    %v203 = vunpack.c.l.b16 %v111
    %v204 = vunpack.c.h.b16 %v111
    %v205 = vunpack.c.l.b16 %v112
    %v206 = vunpack.c.h.b16 %v112
    %v207 = vunpack.c.l.b16 %v113
    %v208 = vunpack.c.h.b16 %v113
    %v209 = vunpack.c.l.b16 %v114
    %v210 = vunpack.c.h.b16 %v114
    %v211 = vunpack.c.l.b16 %v115
    %v212 = vunpack.c.h.b16 %v115
    %v213 = vunpack.c.l.b16 %v116
    %v214 = vunpack.c.h.b16 %v116
    %v215 = vunpack.c.l.b16 %v117
    %v216 = vunpack.c.h.b16 %v117
    %v217 = vunpack.c.l.b16 %v118
    %v218 = vunpack.c.h.b16 %v118
    %v219 = vunpack.c.l.b16 %v119
    %v220 = vunpack.c.h.b16 %v119
    %v221 = vunpack.c.l.b16 %v120
    %v222 = vunpack.c.h.b16 %v120
    %v223 = vunpack.c.l.b16 %v121
    %v224 = vunpack.c.h.b16 %v121
    %v225 = vpack.c.b16 %v163, %v161
    %v226 = vpack.c.b16 %v164, %v162
    %v227 = vpack.c.b16 %v167, %v165
    %v228 = vpack.c.b16 %v168, %v166
    %v229 = vpack.c.b16 %v171, %v169
    %v230 = vpack.c.b16 %v172, %v170
    %v231 = vpack.c.b16 %v175, %v173
    %v232 = vpack.c.b16 %v176, %v174
    %v233 = vpack.c.b16 %v179, %v177
    %v234 = vpack.c.b16 %v180, %v178
    %v235 = vpack.c.b16 %v183, %v181
    %v236 = vpack.c.b16 %v184, %v182
    %v237 = vpack.c.b16 %v187, %v185
    %v238 = vpack.c.b16 %v188, %v186
    %v239 = vpack.c.b16 %v191, %v189
    %v240 = vpack.c.b16 %v192, %v190
    %v241 = vpack.c.b16 %v195, %v193
    %v242 = vpack.c.b16 %v196, %v194
    %v243 = vpack.c.b16 %v199, %v197
    %v244 = vpack.c.b16 %v200, %v198
    %v245 = vpack.c.b16 %v203, %v201
    %v246 = vpack.c.b16 %v204, %v202
    %v247 = vpack.c.b16 %v207, %v205
    %v248 = vpack.c.b16 %v208, %v206
    %v249 = vpack.c.b16 %v211, %v209
    %v250 = vpack.c.b16 %v212, %v210
    %v251 = vpack.c.b16 %v215, %v213
    %v252 = vpack.c.b16 %v216, %v214
    %v253 = vpack.c.b16 %v219, %v217
    %v254 = vpack.c.b16 %v220, %v218
    %v255 = vpack.c.b16 %v223, %v221
    %v256 = vpack.c.b16 %v224, %v222
    %289 = vmatprep.subr.bf16.mxu0 %v226
    %290 = vmatpush1.bf16.msra.mxu0 %v225
    %291 = vmatprep.subr.bf16.mxu0 %v228
    %292 = vmatpush1.bf16.msra.mxu0 %v227
    %293 = vmatprep.subr.bf16.mxu0 %v230
    %294 = vmatpush1.bf16.msra.mxu0 %v229
    %295 = vmatprep.subr.bf16.mxu0 %v232
    %296 = vmatpush1.bf16.msra.mxu0 %v231
    %297 = vmatprep.subr.bf16.mxu0 %v234
    %298 = vmatpush1.bf16.msra.mxu0 %v233
    %299 = vmatprep.subr.bf16.mxu0 %v236
    %300 = vmatpush1.bf16.msra.mxu0 %v235
    %301 = vmatprep.subr.bf16.mxu0 %v238
    %302 = vmatpush1.bf16.msra.mxu0 %v237
    %303 = vmatprep.subr.bf16.mxu0 %v240
    %304 = vmatpush1.bf16.msra.mxu0 %v239
    %305 = vmatprep.subr.bf16.mxu0 %v242
    %306 = vmatpush1.bf16.msra.mxu0 %v241
    %307 = vmatprep.subr.bf16.mxu0 %v244
    %308 = vmatpush1.bf16.msra.mxu0 %v243
    %309 = vmatprep.subr.bf16.mxu0 %v246
    %310 = vmatpush1.bf16.msra.mxu0 %v245
    %311 = vmatprep.subr.bf16.mxu0 %v248
    %312 = vmatpush1.bf16.msra.mxu0 %v247
    %313 = vmatprep.subr.bf16.mxu0 %v250
    %314 = vmatpush1.bf16.msra.mxu0 %v249
    %315 = vmatprep.subr.bf16.mxu0 %v252
    %316 = vmatpush1.bf16.msra.mxu0 %v251
    %317 = vmatprep.subr.bf16.mxu0 %v254
    %318 = vmatpush1.bf16.msra.mxu0 %v253
    %319 = vmatprep.subr.bf16.mxu0 %v256
    %320 = vmatpush1.bf16.msra.mxu0 %v255
    %321 = vmatprep.mubr.bf16.mxu0 %v126
    %322 = vmatmul.mubr.bf16.gmra.mrb[0].mxu0 %v125
    %v323 = vpop.f32.mrb[0].mxu0
    %v324 = vadd.f32 0.0, %v323
    %v325 = vpop.f32.mrb[0].mxu0
    %v326 = vadd.f32 0.0, %v325
    %v327 = vpop.f32.mrb[0].mxu0
    %v328 = vpop.f32.mrb[0].mxu0
    %329 = vdwg.mxu0
    %v330 = vadd.f32 %v87, %v324
    %v331 = vadd.f32 %v88, %v326
    %332 = vst [vmem:[#allocation2] sm:$0xff] %v330
    %333 = vst [vmem:[#allocation2 + $0x8] sm:$0xff] %v331
    // Predicated region
    $region50: #{tpu_custom_call.1} parent=1 // pred_check
      %p334 = pneg %p81
    $region51: #{tpu_custom_call.1} parent=1 // pred_check_branch
      %336 = sbr.rel (%p334) target = $region53
    $region52: #{tpu_custom_call.1} parent=1 // pred_region
      %v337 = vld [vmem:[#allocation2] sm:$0xff]
      %v338 = vld [vmem:[#allocation2 + $0x8] sm:$0xff]
      %v339 = vld [vmem:[%s2] sm:$0x3]
      %v341 = vlaneseq
      %v342 = vshrl.u32 %v341, 7
      %v343 = vsub.s32 0, %v342
      %v344 = vrot.slane %v339, %v343
      %v345 = vlaneseq
      %v346 = vshrl.u32 %v345, 7
      %v347 = vsub.s32 1, %v346
      %v348 = vrot.slane %v339, %v347
      %v351 = vadd.f32 %v337, %v344
      %v352 = vadd.f32 %v338, %v348
      %v353 = vmax.f32 %v351, 0.0
      %v354 = vmax.f32 %v352, 0.0
      %v355 = vpack.c.bf16 %v353, %v353
      %v356 = vpack.c.bf16 %v354, %v354
      %v357 = vld [vmem:[#allocation8] sm:$0xff]
      %v358 = vld [vmem:[#allocation8 + $0x8] sm:$0xff]
      %v359 = vld [vmem:[#allocation8 + $0x10] sm:$0xff]
      %v360 = vld [vmem:[#allocation8 + $0x18] sm:$0xff]
      %v361 = vld [vmem:[#allocation8 + $0x20] sm:$0xff]
      %v362 = vld [vmem:[#allocation8 + $0x28] sm:$0xff]
      %v363 = vld [vmem:[#allocation8 + $0x30] sm:$0xff]
      %v364 = vld [vmem:[#allocation8 + $0x38] sm:$0xff]
      %v365 = vld [vmem:[#allocation8 + $0x40] sm:$0xff]
      %v366 = vld [vmem:[#allocation8 + $0x48] sm:$0xff]
      %v367 = vld [vmem:[#allocation8 + $0x50] sm:$0xff]
      %v368 = vld [vmem:[#allocation8 + $0x58] sm:$0xff]
      %v369 = vld [vmem:[#allocation8 + $0x60] sm:$0xff]
      %v370 = vld [vmem:[#allocation8 + $0x68] sm:$0xff]
      %v371 = vld [vmem:[#allocation8 + $0x70] sm:$0xff]
      %v372 = vld [vmem:[#allocation8 + $0x78] sm:$0xff]
      %v373 = vld [vmem:[#allocation8 + $0x80] sm:$0xff]
      %v374 = vld [vmem:[#allocation8 + $0x88] sm:$0xff]
      %v375 = vld [vmem:[#allocation8 + $0x90] sm:$0xff]
      %v376 = vld [vmem:[#allocation8 + $0x98] sm:$0xff]
      %v377 = vld [vmem:[#allocation8 + $0xa0] sm:$0xff]
      %v378 = vld [vmem:[#allocation8 + $0xa8] sm:$0xff]
      %v379 = vld [vmem:[#allocation8 + $0xb0] sm:$0xff]
      %v380 = vld [vmem:[#allocation8 + $0xb8] sm:$0xff]
      %v381 = vld [vmem:[#allocation8 + $0xc0] sm:$0xff]
      %v382 = vld [vmem:[#allocation8 + $0xc8] sm:$0xff]
      %v383 = vld [vmem:[#allocation8 + $0xd0] sm:$0xff]
      %v384 = vld [vmem:[#allocation8 + $0xd8] sm:$0xff]
      %v385 = vld [vmem:[#allocation8 + $0xe0] sm:$0xff]
      %v386 = vld [vmem:[#allocation8 + $0xe8] sm:$0xff]
      %v387 = vld [vmem:[#allocation8 + $0xf0] sm:$0xff]
      %v388 = vld [vmem:[#allocation8 + $0xf8] sm:$0xff]
      %v389 = vld [vmem:[%s4] sm:$0x3]
      %v391 = vlaneseq
      %v392 = vshrl.u32 %v391, 7
      %v393 = vsub.s32 0, %v392
      %v394 = vrot.slane %v389, %v393
      %v395 = vlaneseq
      %v396 = vshrl.u32 %v395, 7
      %v397 = vsub.s32 1, %v396
      %v398 = vrot.slane %v389, %v397
      %v433 = vunpack.c.l.b16 %v357
      %v434 = vunpack.c.h.b16 %v357
      %v435 = vunpack.c.l.b16 %v358
      %v436 = vunpack.c.h.b16 %v358
      %v437 = vunpack.c.l.b16 %v359
      %v438 = vunpack.c.h.b16 %v359
      %v439 = vunpack.c.l.b16 %v360
      %v440 = vunpack.c.h.b16 %v360
      %v441 = vunpack.c.l.b16 %v361
      %v442 = vunpack.c.h.b16 %v361
      %v443 = vunpack.c.l.b16 %v362
      %v444 = vunpack.c.h.b16 %v362
      %v445 = vunpack.c.l.b16 %v363
      %v446 = vunpack.c.h.b16 %v363
      %v447 = vunpack.c.l.b16 %v364
      %v448 = vunpack.c.h.b16 %v364
      %v449 = vunpack.c.l.b16 %v365
      %v450 = vunpack.c.h.b16 %v365
      %v451 = vunpack.c.l.b16 %v366
      %v452 = vunpack.c.h.b16 %v366
      %v453 = vunpack.c.l.b16 %v367
      %v454 = vunpack.c.h.b16 %v367
      %v455 = vunpack.c.l.b16 %v368
      %v456 = vunpack.c.h.b16 %v368
      %v457 = vunpack.c.l.b16 %v369
      %v458 = vunpack.c.h.b16 %v369
      %v459 = vunpack.c.l.b16 %v370
      %v460 = vunpack.c.h.b16 %v370
      %v461 = vunpack.c.l.b16 %v371
      %v462 = vunpack.c.h.b16 %v371
      %v463 = vunpack.c.l.b16 %v372
      %v464 = vunpack.c.h.b16 %v372
      %v465 = vunpack.c.l.b16 %v373
      %v466 = vunpack.c.h.b16 %v373
      %v467 = vunpack.c.l.b16 %v374
      %v468 = vunpack.c.h.b16 %v374
      %v469 = vunpack.c.l.b16 %v375
      %v470 = vunpack.c.h.b16 %v375
      %v471 = vunpack.c.l.b16 %v376
      %v472 = vunpack.c.h.b16 %v376
      %v473 = vunpack.c.l.b16 %v377
      %v474 = vunpack.c.h.b16 %v377
      %v475 = vunpack.c.l.b16 %v378
      %v476 = vunpack.c.h.b16 %v378
      %v477 = vunpack.c.l.b16 %v379
      %v478 = vunpack.c.h.b16 %v379
      %v479 = vunpack.c.l.b16 %v380
      %v480 = vunpack.c.h.b16 %v380
      %v481 = vunpack.c.l.b16 %v381
      %v482 = vunpack.c.h.b16 %v381
      %v483 = vunpack.c.l.b16 %v382
      %v484 = vunpack.c.h.b16 %v382
      %v485 = vunpack.c.l.b16 %v383
      %v486 = vunpack.c.h.b16 %v383
      %v487 = vunpack.c.l.b16 %v384
      %v488 = vunpack.c.h.b16 %v384
      %v489 = vunpack.c.l.b16 %v385
      %v490 = vunpack.c.h.b16 %v385
      %v491 = vunpack.c.l.b16 %v386
      %v492 = vunpack.c.h.b16 %v386
      %v493 = vunpack.c.l.b16 %v387
      %v494 = vunpack.c.h.b16 %v387
      %v495 = vunpack.c.l.b16 %v388
      %v496 = vunpack.c.h.b16 %v388
      %v497 = vpack.c.b16 %v435, %v433
      %v498 = vpack.c.b16 %v436, %v434
      %v499 = vpack.c.b16 %v439, %v437
      %v500 = vpack.c.b16 %v440, %v438
      %v501 = vpack.c.b16 %v443, %v441
      %v502 = vpack.c.b16 %v444, %v442
      %v503 = vpack.c.b16 %v447, %v445
      %v504 = vpack.c.b16 %v448, %v446
      %v505 = vpack.c.b16 %v451, %v449
      %v506 = vpack.c.b16 %v452, %v450
      %v507 = vpack.c.b16 %v455, %v453
      %v508 = vpack.c.b16 %v456, %v454
      %v509 = vpack.c.b16 %v459, %v457
      %v510 = vpack.c.b16 %v460, %v458
      %v511 = vpack.c.b16 %v463, %v461
      %v512 = vpack.c.b16 %v464, %v462
      %v513 = vpack.c.b16 %v467, %v465
      %v514 = vpack.c.b16 %v468, %v466
      %v515 = vpack.c.b16 %v471, %v469
      %v516 = vpack.c.b16 %v472, %v470
      %v517 = vpack.c.b16 %v475, %v473
      %v518 = vpack.c.b16 %v476, %v474
      %v519 = vpack.c.b16 %v479, %v477
      %v520 = vpack.c.b16 %v480, %v478
      %v521 = vpack.c.b16 %v483, %v481
      %v522 = vpack.c.b16 %v484, %v482
      %v523 = vpack.c.b16 %v487, %v485
      %v524 = vpack.c.b16 %v488, %v486
      %v525 = vpack.c.b16 %v491, %v489
      %v526 = vpack.c.b16 %v492, %v490
      %v527 = vpack.c.b16 %v495, %v493
      %v528 = vpack.c.b16 %v496, %v494
      %561 = vmatprep.subr.bf16.mxu0 %v498
      %562 = vmatpush1.bf16.msra.mxu0 %v497
      %563 = vmatprep.subr.bf16.mxu0 %v500
      %564 = vmatpush1.bf16.msra.mxu0 %v499
      %565 = vmatprep.subr.bf16.mxu0 %v502
      %566 = vmatpush1.bf16.msra.mxu0 %v501
      %567 = vmatprep.subr.bf16.mxu0 %v504
      %568 = vmatpush1.bf16.msra.mxu0 %v503
      %569 = vmatprep.subr.bf16.mxu0 %v506
      %570 = vmatpush1.bf16.msra.mxu0 %v505
      %571 = vmatprep.subr.bf16.mxu0 %v508
      %572 = vmatpush1.bf16.msra.mxu0 %v507
      %573 = vmatprep.subr.bf16.mxu0 %v510
      %574 = vmatpush1.bf16.msra.mxu0 %v509
      %575 = vmatprep.subr.bf16.mxu0 %v512
      %576 = vmatpush1.bf16.msra.mxu0 %v511
      %577 = vmatprep.subr.bf16.mxu0 %v514
      %578 = vmatpush1.bf16.msra.mxu0 %v513
      %579 = vmatprep.subr.bf16.mxu0 %v516
      %580 = vmatpush1.bf16.msra.mxu0 %v515
      %581 = vmatprep.subr.bf16.mxu0 %v518
      %582 = vmatpush1.bf16.msra.mxu0 %v517
      %583 = vmatprep.subr.bf16.mxu0 %v520
      %584 = vmatpush1.bf16.msra.mxu0 %v519
      %585 = vmatprep.subr.bf16.mxu0 %v522
      %586 = vmatpush1.bf16.msra.mxu0 %v521
      %587 = vmatprep.subr.bf16.mxu0 %v524
      %588 = vmatpush1.bf16.msra.mxu0 %v523
      %589 = vmatprep.subr.bf16.mxu0 %v526
      %590 = vmatpush1.bf16.msra.mxu0 %v525
      %591 = vmatprep.subr.bf16.mxu0 %v528
      %592 = vmatpush1.bf16.msra.mxu0 %v527
      %593 = vmatprep.mubr.bf16.mxu0 %v356
      %594 = vmatmul.mubr.bf16.gmra.mrb[0].mxu0 %v355
      %v595 = vpop.f32.mrb[0].mxu0
      %v596 = vadd.f32 %v394, %v595
      %v597 = vpop.f32.mrb[0].mxu0
      %v598 = vadd.f32 %v398, %v597
      %v599 = vpop.f32.mrb[0].mxu0
      %v600 = vpop.f32.mrb[0].mxu0
      %601 = vdwg.mxu0
      %v602 = vmax.f32 %v596, 0.0
      %v603 = vmax.f32 %v598, 0.0
      %v604 = vpack.c.bf16 %v602, %v602
      %v605 = vpack.c.bf16 %v603, %v603
      %v606 = vld [vmem:[#allocation9] sm:$0xf]
      %v607 = vld [vmem:[#allocation9 + $0x4] sm:$0xf]
      %v608 = vld [vmem:[#allocation9 + $0x8] sm:$0xf]
      %v609 = vld [vmem:[#allocation9 + $0xc] sm:$0xf]
      %v610 = vld [vmem:[#allocation9 + $0x10] sm:$0xf]
      %v611 = vld [vmem:[#allocation9 + $0x14] sm:$0xf]
      %v612 = vld [vmem:[#allocation9 + $0x18] sm:$0xf]
      %v613 = vld [vmem:[#allocation9 + $0x1c] sm:$0xf]
      %v614 = vld [vmem:[#allocation9 + $0x20] sm:$0xf]
      %v615 = vld [vmem:[#allocation9 + $0x24] sm:$0xf]
      %v616 = vld [vmem:[#allocation9 + $0x28] sm:$0xf]
      %v617 = vld [vmem:[#allocation9 + $0x2c] sm:$0xf]
      %v618 = vld [vmem:[#allocation9 + $0x30] sm:$0xf]
      %v619 = vld [vmem:[#allocation9 + $0x34] sm:$0xf]
      %v620 = vld [vmem:[#allocation9 + $0x38] sm:$0xf]
      %v621 = vld [vmem:[#allocation9 + $0x3c] sm:$0xf]
      %v622 = vld [vmem:[#allocation9 + $0x40] sm:$0xf]
      %v623 = vld [vmem:[#allocation9 + $0x44] sm:$0xf]
      %v624 = vld [vmem:[#allocation9 + $0x48] sm:$0xf]
      %v625 = vld [vmem:[#allocation9 + $0x4c] sm:$0xf]
      %v626 = vld [vmem:[#allocation9 + $0x50] sm:$0xf]
      %v627 = vld [vmem:[#allocation9 + $0x54] sm:$0xf]
      %v628 = vld [vmem:[#allocation9 + $0x58] sm:$0xf]
      %v629 = vld [vmem:[#allocation9 + $0x5c] sm:$0xf]
      %v630 = vld [vmem:[#allocation9 + $0x60] sm:$0xf]
      %v631 = vld [vmem:[#allocation9 + $0x64] sm:$0xf]
      %v632 = vld [vmem:[#allocation9 + $0x68] sm:$0xf]
      %v633 = vld [vmem:[#allocation9 + $0x6c] sm:$0xf]
      %v634 = vld [vmem:[#allocation9 + $0x70] sm:$0xf]
      %v635 = vld [vmem:[#allocation9 + $0x74] sm:$0xf]
      %v636 = vld [vmem:[#allocation9 + $0x78] sm:$0xf]
      %v637 = vld [vmem:[#allocation9 + $0x7c] sm:$0xf]
      %v638 = vld [vmem:[%s6] sm:$0x1]
      %v640 = vlaneseq
      %v641 = vshrl.u32 %v640, 7
      %v642 = vsub.s32 0, %v641
      %v643 = vrot.slane %v638, %v642
      %v677 = vunpack.c.l.b16 %v606
      %v678 = vunpack.c.l.b16 %v607
      %v679 = vunpack.c.l.b16 %v608
      %v680 = vunpack.c.l.b16 %v609
      %v681 = vunpack.c.l.b16 %v610
      %v682 = vunpack.c.l.b16 %v611
      %v683 = vunpack.c.l.b16 %v612
      %v684 = vunpack.c.l.b16 %v613
      %v685 = vunpack.c.l.b16 %v614
      %v686 = vunpack.c.l.b16 %v615
      %v687 = vunpack.c.l.b16 %v616
      %v688 = vunpack.c.l.b16 %v617
      %v689 = vunpack.c.l.b16 %v618
      %v690 = vunpack.c.l.b16 %v619
      %v691 = vunpack.c.l.b16 %v620
      %v692 = vunpack.c.l.b16 %v621
      %v693 = vunpack.c.l.b16 %v622
      %v694 = vunpack.c.l.b16 %v623
      %v695 = vunpack.c.l.b16 %v624
      %v696 = vunpack.c.l.b16 %v625
      %v697 = vunpack.c.l.b16 %v626
      %v698 = vunpack.c.l.b16 %v627
      %v699 = vunpack.c.l.b16 %v628
      %v700 = vunpack.c.l.b16 %v629
      %v701 = vunpack.c.l.b16 %v630
      %v702 = vunpack.c.l.b16 %v631
      %v703 = vunpack.c.l.b16 %v632
      %v704 = vunpack.c.l.b16 %v633
      %v705 = vunpack.c.l.b16 %v634
      %v706 = vunpack.c.l.b16 %v635
      %v707 = vunpack.c.l.b16 %v636
      %v708 = vunpack.c.l.b16 %v637
      %v709 = vpack.c.b16 %v678, %v677
      %v710 = vpack.c.b16 %v680, %v679
      %v711 = vpack.c.b16 %v682, %v681
      %v712 = vpack.c.b16 %v684, %v683
      %v713 = vpack.c.b16 %v686, %v685
      %v714 = vpack.c.b16 %v688, %v687
      %v715 = vpack.c.b16 %v690, %v689
      %v716 = vpack.c.b16 %v692, %v691
      %v717 = vpack.c.b16 %v694, %v693
      %v718 = vpack.c.b16 %v696, %v695
      %v719 = vpack.c.b16 %v698, %v697
      %v720 = vpack.c.b16 %v700, %v699
      %v721 = vpack.c.b16 %v702, %v701
      %v722 = vpack.c.b16 %v704, %v703
      %v723 = vpack.c.b16 %v706, %v705
      %v724 = vpack.c.b16 %v708, %v707
      %741 = vmatprep.subr.bf16.mxu0 0
      %742 = vmatpush1.bf16.msra.mxu0 %v709
      %743 = vmatprep.subr.bf16.mxu0 0
      %744 = vmatpush1.bf16.msra.mxu0 %v710
      %745 = vmatprep.subr.bf16.mxu0 0
      %746 = vmatpush1.bf16.msra.mxu0 %v711
      %747 = vmatprep.subr.bf16.mxu0 0
      %748 = vmatpush1.bf16.msra.mxu0 %v712
      %749 = vmatprep.subr.bf16.mxu0 0
      %750 = vmatpush1.bf16.msra.mxu0 %v713
      %751 = vmatprep.subr.bf16.mxu0 0
      %752 = vmatpush1.bf16.msra.mxu0 %v714
      %753 = vmatprep.subr.bf16.mxu0 0
      %754 = vmatpush1.bf16.msra.mxu0 %v715
      %755 = vmatprep.subr.bf16.mxu0 0
      %756 = vmatpush1.bf16.msra.mxu0 %v716
      %757 = vmatprep.subr.bf16.mxu0 0
      %758 = vmatpush1.bf16.msra.mxu0 %v717
      %759 = vmatprep.subr.bf16.mxu0 0
      %760 = vmatpush1.bf16.msra.mxu0 %v718
      %761 = vmatprep.subr.bf16.mxu0 0
      %762 = vmatpush1.bf16.msra.mxu0 %v719
      %763 = vmatprep.subr.bf16.mxu0 0
      %764 = vmatpush1.bf16.msra.mxu0 %v720
      %765 = vmatprep.subr.bf16.mxu0 0
      %766 = vmatpush1.bf16.msra.mxu0 %v721
      %767 = vmatprep.subr.bf16.mxu0 0
      %768 = vmatpush1.bf16.msra.mxu0 %v722
      %769 = vmatprep.subr.bf16.mxu0 0
      %770 = vmatpush1.bf16.msra.mxu0 %v723
      %771 = vmatprep.subr.bf16.mxu0 0
      %772 = vmatpush1.bf16.msra.mxu0 %v724
      %773 = vmatprep.mubr.bf16.mxu0 %v605
      %774 = vmatmul.mubr.bf16.gmra.mrb[0].mxu0 %v604
      %v775 = vpop.f32.mrb[0].mxu0
      %v776 = vadd.f32 %v643, %v775
      %v777 = vpop.f32.mrb[0].mxu0
      %v778 = vpop.f32.mrb[0].mxu0
      %v779 = vpop.f32.mrb[0].mxu0
      %780 = vdwg.mxu0
      %781 = vst [vmem:[#allocation11] sm:$0xff] %v776
    $region53: #{tpu_custom_call.1} parent=1 // pred_fallthru
      _
    // Predicated region
    $region54: #{tpu_custom_call.1} parent=1 // pred_check
      _
    $region55: #{tpu_custom_call.1} parent=1 // pred_check_branch
      %783 = sbr.rel (0) target = $region57
    $region56: #{tpu_custom_call.1} parent=1 // pred_region
      %s785 = ssub.s32 128, 128
      %786 = vsyncadd [#allocation5], %s785
      %s788 = sshll.u32 [#allocation11], 4
      %s789 = int_to_ptr.vmem [resolvable:$true] %s788
      %791 = dma.vmem_to_hbm [thread:$0]  %s789, 128, %s7, [#allocation5]
    $region57: #{tpu_custom_call.1} parent=1 // pred_fallthru
      _
    // Predicated region
    $region58: #{tpu_custom_call.1} parent=1 // pred_check
      _
    $region59: #{tpu_custom_call.1} parent=1 // pred_check_branch
      %793 = sbr.rel (0) target = $region61
    $region60: #{tpu_custom_call.1} parent=1 // pred_region
      %794 = dma.done [#allocation5], 128
    $region61: #{tpu_custom_call.1} parent=1 // pred_fallthru
      _
    %795 = vsyncpa [#allocation4], 1
    %796 = vsyncpa [#allocation7], 1
    %797 = vsyncpa [#allocation10], 1
    %798 = vsyncpa [#allocation5], 1

</llo_original>
